<compile_context>
chip_gen: v6e
topology: v6e:2x2x1
jax: 0.10.0
libtpu: 0.0.40
codegen_flags: <defaults>
</compile_context>

<pallas_src>
import functools

import jax
import jax.numpy as jnp
import numpy as np
from jax import lax
from jax.experimental import pallas as pl
from jax.experimental.pallas import tpu as pltpu


def _smc_kernel(x_ref, w_ref, b_ref, o_ref, *, stride, row_chunk):
    # x_ref: (Bb, Hp, Wo, K)   width-stacked rows, K = kW*Cin   (compute dtype)
    # w_ref: (kH, K, CoutP)    scales*gain pre-folded           (compute dtype)
    # b_ref: (1, CoutP)        f32 bias
    # o_ref: (Bb, Ho, Wo, CoutP)
    Bb, Ho, Wo, CoutP = o_ref.shape
    kH = w_ref.shape[0]
    K = x_ref.shape[-1]

    # M-chunking keeps the f32 accumulator small (vreg-resident) while the kH
    # taps are summed.  For stride > 1 we fall back to one output row per chunk
    # so every tap read is a plain contiguous slice (no strided value slicing).
    rc = row_chunk if stride == 1 else 1
    for r0 in range(0, Ho, rc):
        rows = min(rc, Ho - r0)
        m = Bb * rows * Wo
        acc = None
        for kh in range(kH):
            start = r0 * stride + kh                    # first input row of this tap
            patch = x_ref[:, pl.ds(start, rows), :, :]  # (Bb, rows, Wo, K)
            part = lax.dot_general(
                patch.reshape(m, K), w_ref[kh],
                dimension_numbers=(((1,), (0,)), ((), ())),
                preferred_element_type=jnp.float32)     # (m, CoutP) on the MXU
            acc = part if acc is None else acc + part   # start from tap 0 (no zero-fill)
        y = acc + b_ref[...]                            # f32 bias epilogue
        o_ref[:, pl.ds(r0, rows), :, :] = y.reshape(Bb, rows, Wo, CoutP).astype(o_ref.dtype)


def _pick_batch_block(B, max_bb=8, min_grid=2):
    """Largest batch block such that the grid still has >= 2 parallel steps
    (keeps both v7x TensorCores busy); falls back to B if B < 2."""
    if B < min_grid:
        return B
    best = 1
    for bb in range(1, min(B, max_bb) + 1):
        if B % bb == 0 and B // bb >= min_grid:
            best = bb
    return best


def smc_forward(x_nchw, weight_oihw, scales, gain, bias, *, stride=1,
                padding=None, compute_dtype=jnp.bfloat16):
    """SMC forward. x_nchw: (B, C_in, H, W). Returns (B, C_out, Ho, Wo)."""
    B, C_in, H, W = x_nchw.shape
    C_out, _, kH, kW = weight_oihw.shape
    if padding is None:
        padding = kH // 2        # matches the module's default (square kernels)

    Ho = (H + 2 * padding - kH) // stride + 1
    Wo = (W + 2 * padding - kW) // stride + 1
    Hp = H + 2 * padding
    K = kW * C_in

    # Lane padding of C_out only when it is large enough to be worth it; for tiny
    # C_out the masked stores are far cheaper than 32x write inflation.
    CoutP = C_out if C_out < 128 else ((C_out + 127) // 128) * 128

    Bb = _pick_batch_block(B)
    out_dtype = x_nchw.dtype

    # ---------------- wrapper glue (plain JAX / XLA) ----------------
    x_nhwc = jnp.transpose(x_nchw, (0, 2, 3, 1))                        # (B, H, W, Cin)
    x_pad = jnp.pad(x_nhwc, ((0, 0), (padding, padding), (padding, padding), (0, 0)))

    # Width-wise tap stacking ("shift-stack"): x_kw[b,h,wo, kw*Cin+ci] =
    # x_pad[b,h, wo*stride+kw, ci].  Merges the kw reduction into the channel dim
    # (contraction depth 4 -> 12, input lane width 4 -> 12) and absorbs the width
    # stride, so the kernel only reduces over kh with plain contiguous reads.
    x_kw = jnp.concatenate(
        [x_pad[:, :, kw: kw + (Wo - 1) * stride + 1: stride, :] for kw in range(kW)],
        axis=-1)                                                        # (B, Hp, Wo, K)

    # Fold per-channel scales and the scalar gain into the weights (exact: no
    # demod, scales shared across the batch); reshape to match the stacked input.
    w_hwio = jnp.transpose(weight_oihw, (2, 3, 1, 0)).astype(jnp.float32)   # (kH,kW,Cin,Cout)
    w_mod = (w_hwio
             * scales.astype(jnp.float32)[None, None, :, None]
             * jnp.reshape(gain, ()).astype(jnp.float32))
    w_mod = w_mod.reshape(kH, K, C_out)
    if CoutP != C_out:
        w_mod = jnp.pad(w_mod, ((0, 0), (0, 0), (0, CoutP - C_out)))

    # bf16 compute path (review): halves DMA bytes / VMEM blocks, 2x MXU rate.
    x_kw = x_kw.astype(compute_dtype)
    w_mod = w_mod.astype(compute_dtype)

    bias_p = bias.astype(jnp.float32)
    if CoutP != C_out:
        bias_p = jnp.pad(bias_p, (0, CoutP - C_out))
    bias_p = bias_p.reshape(1, CoutP)

    # Chunk M so each chunk's accumulator is ~256 rows (vreg-resident).
    row_chunk = max(1, min(Ho, 256 // max(1, Bb * Wo)))

    # ---------------- VMEM budget, generation-aware cap ----------------
    cds = jnp.dtype(compute_dtype).itemsize
    ods = jnp.dtype(out_dtype).itemsize
    in_blk = Bb * Hp * Wo * K * cds
    out_blk = Bb * Ho * Wo * CoutP * ods
    w_blk = kH * K * CoutP * cds + CoutP * 4
    chunk_m = Bb * row_chunk * Wo
    tmp_blk = chunk_m * (kH * K * cds + 2 * CoutP * 4)
    est = 2 * (in_blk + out_blk) + 2 * w_blk + tmp_blk + (2 << 20)
    try:
        vmem_cap = int(pltpu.get_tpu_info().vmem_capacity_bytes)
    except Exception:
        vmem_cap = 64 << 20          # conservative: v7x per-TensorCore VMEM
    vmem_limit = int(min(max(est, 8 << 20), int(0.75 * vmem_cap)))

    kernel = functools.partial(_smc_kernel, stride=stride, row_chunk=row_chunk)

    # NOTE: weight/bias blocks have a constant index_map, so the pipeline does
    # not re-DMA them across grid steps; they are tiny here, so pl.Buffered(1)
    # residency savings are not worth the extra knob.
    out_nhwc = pl.pallas_call(
        kernel,
        out_shape=jax.ShapeDtypeStruct((B, Ho, Wo, CoutP), out_dtype),
        grid_spec=pltpu.PrefetchScalarGridSpec(
            num_scalar_prefetch=0,
            grid=(B // Bb,),
            in_specs=[
                pl.BlockSpec((Bb, Hp, Wo, K), lambda b: (b, 0, 0, 0)),
                pl.BlockSpec((kH, K, CoutP), lambda b: (0, 0, 0)),
                pl.BlockSpec((1, CoutP), lambda b: (0, 0)),
            ],
            out_specs=pl.BlockSpec((Bb, Ho, Wo, CoutP), lambda b: (b, 0, 0, 0)),
        ),
        compiler_params=pltpu.CompilerParams(
            dimension_semantics=("parallel",),
            vmem_limit_bytes=vmem_limit),
    )(x_kw, w_mod, bias_p)

    if CoutP != C_out:
        out_nhwc = out_nhwc[..., :C_out]
    return jnp.transpose(out_nhwc, (0, 3, 1, 2))                        # back to NCHW


# ---------------- references (pure JAX, mirror the PyTorch module) ----------------
def _conv_ref(x_nchw, w_oihw, bias, *, stride, padding):
    y = lax.conv_general_dilated(
        x_nchw, w_oihw, window_strides=(stride, stride),
        padding=[(padding, padding), (padding, padding)],
        dimension_numbers=("NCHW", "OIHW", "NCHW"))
    return y + bias[None, :, None, None]


def _smc_reference(x, weight, scales, gain, bias, *, stride, padding):
    # conv2d(x, w * s) * gain + bias, with s identical for every sample.
    w_mod = weight * scales[None, :, None, None]
    y = lax.conv_general_dilated(
        x, w_mod, window_strides=(stride, stride),
        padding=[(padding, padding), (padding, padding)],
        dimension_numbers=("NCHW", "OIHW", "NCHW"))
    y = y * jnp.reshape(gain, ())
    return y + bias[None, :, None, None]


if __name__ == "__main__":
    # Small shapes consistent with the module: B=2, C_in=C_out=4, H=W=16, k=3.
    B, C_in, C_out, H, W = 2, 4, 4, 16, 16
    kH = kW = 3

    key = jax.random.PRNGKey(0)
    kx, kw_, ks, kb = jax.random.split(key, 4)
    x = jax.random.normal(kx, (B, C_in, H, W), dtype=jnp.float32)
    weight = jax.random.normal(kw_, (C_out, C_in, kH, kW), dtype=jnp.float32)
    # Learnable params (module inits them to ones/zeros; use non-trivial values
    # so the scale / gain / bias folding is genuinely exercised).
    scales = 1.0 + 0.25 * jax.random.normal(ks, (C_in,), dtype=jnp.float32)
    gain = jnp.asarray([1.3], dtype=jnp.float32)
    bias = 0.1 * jax.random.normal(kb, (C_out,), dtype=jnp.float32)

    # 1) f32 compute path, stride 1: algorithm is exact vs. the module.
    out = jax.block_until_ready(
        smc_forward(x, weight, scales, gain, bias, stride=1, padding=1,
                    compute_dtype=jnp.float32))
    ref = _smc_reference(x, weight, scales, gain, bias, stride=1, padding=1)
    np.testing.assert_allclose(np.asarray(out), np.asarray(ref), atol=5e-4, rtol=5e-4)

    # 2) stride-2 path (previously untested).
    out_s2 = jax.block_until_ready(
        smc_forward(x, weight, scales, gain, bias, stride=2, padding=1,
                    compute_dtype=jnp.float32))
    ref_s2 = _smc_reference(x, weight, scales, gain, bias, stride=2, padding=1)
    np.testing.assert_allclose(np.asarray(out_s2), np.asarray(ref_s2), atol=5e-4, rtol=5e-4)

    # 3) bf16 compute path (perf-recommended).  Compared against a reference fed
    #    the identically bf16-quantised activations / folded weights so the check
    #    stays tight (remaining difference is f32 accumulation order only).
    out_bf16 = jax.block_until_ready(
        smc_forward(x, weight, scales, gain, bias, stride=1, padding=1,
                    compute_dtype=jnp.bfloat16))
    w_fold = weight * scales[None, :, None, None] * jnp.reshape(gain, ())
    w_q = w_fold.astype(jnp.bfloat16).astype(jnp.float32)
    x_q = x.astype(jnp.bfloat16).astype(jnp.float32)
    ref_q = _conv_ref(x_q, w_q, bias, stride=1, padding=1)
    np.testing.assert_allclose(np.asarray(out_bf16), np.asarray(ref_q), atol=2e-3, rtol=2e-3)

    print("KERNEL_OK")
</pallas_src>

<mosaic_0001>
module attributes {stable_mosaic.version = 11 : i64} {
  func.func @_smc_kernel(%arg0: i32, %arg1: memref<1x18x16x12xf32, #tpu.memory_space<vmem>>, %arg2: memref<3x12x4xf32, #tpu.memory_space<vmem>>, %arg3: memref<1x4xf32, #tpu.memory_space<vmem>>, %arg4: memref<1x16x16x4xf32, #tpu.memory_space<vmem>>) attributes {dimension_semantics = [#tpu.dimension_semantics<parallel>], iteration_bounds = array<i64: 2>, scalar_prefetch = 0 : i64, scratch_operands = 0 : i64, tpu.core_type = #tpu.core_type<tc>, window_params = [{transform_indices = @transform_0, window_bounds = array<i64: 1, 18, 16, 12>}, {pipeline_mode = #tpu.pipeline_mode<synchronous>, transform_indices = @transform_1, window_bounds = array<i64: 3, 12, 4>}, {pipeline_mode = #tpu.pipeline_mode<synchronous>, transform_indices = @transform_2, window_bounds = array<i64: 1, 4>}, {transform_indices = @transform_3, window_bounds = array<i64: 1, 16, 16, 4>}]} {
    %c0 = arith.constant 0 : index
    %c0_0 = arith.constant 0 : index
    %c0_1 = arith.constant 0 : index
    %c0_2 = arith.constant 0 : index
    %0 = vector.load %arg1[%c0, %c0_0, %c0_1, %c0_2] : memref<1x18x16x12xf32, #tpu.memory_space<vmem>>, vector<1x16x16x12xf32>
    %1 = vector.shape_cast %0 : vector<1x16x16x12xf32> to vector<256x12xf32>
    %c0_3 = arith.constant 0 : index
    %c0_4 = arith.constant 0 : index
    %c0_5 = arith.constant 0 : index
    %2 = vector.load %arg2[%c0_3, %c0_4, %c0_5] : memref<3x12x4xf32, #tpu.memory_space<vmem>>, vector<1x12x4xf32>
    %3 = vector.shape_cast %2 : vector<1x12x4xf32> to vector<12x4xf32>
    %cst = arith.constant dense<0.000000e+00> : vector<256x4xf32>
    %4 = tpu.matmul %1, %3, %cst {dimension_numbers = #tpu.dot_dimension_numbers<[1], [0], [0], [1], [0, 0, 1, 1], [], []>} : vector<256x12xf32>, vector<12x4xf32>, vector<256x4xf32> -> vector<256x4xf32>
    %c0_6 = arith.constant 0 : index
    %c1 = arith.constant 1 : index
    %c0_7 = arith.constant 0 : index
    %c0_8 = arith.constant 0 : index
    %5 = vector.load %arg1[%c0_6, %c1, %c0_7, %c0_8] : memref<1x18x16x12xf32, #tpu.memory_space<vmem>>, vector<1x16x16x12xf32>
    %6 = vector.shape_cast %5 : vector<1x16x16x12xf32> to vector<256x12xf32>
    %c1_9 = arith.constant 1 : index
    %c0_10 = arith.constant 0 : index
    %c0_11 = arith.constant 0 : index
    %7 = vector.load %arg2[%c1_9, %c0_10, %c0_11] : memref<3x12x4xf32, #tpu.memory_space<vmem>>, vector<1x12x4xf32>
    %8 = vector.shape_cast %7 : vector<1x12x4xf32> to vector<12x4xf32>
    %cst_12 = arith.constant dense<0.000000e+00> : vector<256x4xf32>
    %9 = tpu.matmul %6, %8, %cst_12 {dimension_numbers = #tpu.dot_dimension_numbers<[1], [0], [0], [1], [0, 0, 1, 1], [], []>} : vector<256x12xf32>, vector<12x4xf32>, vector<256x4xf32> -> vector<256x4xf32>
    %10 = arith.addf %4, %9 : vector<256x4xf32>
    %c0_13 = arith.constant 0 : index
    %c2 = arith.constant 2 : index
    %c0_14 = arith.constant 0 : index
    %c0_15 = arith.constant 0 : index
    %11 = vector.load %arg1[%c0_13, %c2, %c0_14, %c0_15] : memref<1x18x16x12xf32, #tpu.memory_space<vmem>>, vector<1x16x16x12xf32>
    %12 = vector.shape_cast %11 : vector<1x16x16x12xf32> to vector<256x12xf32>
    %c2_16 = arith.constant 2 : index
    %c0_17 = arith.constant 0 : index
    %c0_18 = arith.constant 0 : index
    %13 = vector.load %arg2[%c2_16, %c0_17, %c0_18] : memref<3x12x4xf32, #tpu.memory_space<vmem>>, vector<1x12x4xf32>
    %14 = vector.shape_cast %13 : vector<1x12x4xf32> to vector<12x4xf32>
    %cst_19 = arith.constant dense<0.000000e+00> : vector<256x4xf32>
    %15 = tpu.matmul %12, %14, %cst_19 {dimension_numbers = #tpu.dot_dimension_numbers<[1], [0], [0], [1], [0, 0, 1, 1], [], []>} : vector<256x12xf32>, vector<12x4xf32>, vector<256x4xf32> -> vector<256x4xf32>
    %16 = arith.addf %10, %15 : vector<256x4xf32>
    %c0_20 = arith.constant 0 : index
    %c0_21 = arith.constant 0 : index
    %17 = vector.load %arg3[%c0_20, %c0_21] : memref<1x4xf32, #tpu.memory_space<vmem>>, vector<1x4xf32>
    %18 = vector.broadcast %17 : vector<1x4xf32> to vector<256x4xf32>
    %19 = arith.addf %16, %18 : vector<256x4xf32>
    %20 = vector.shape_cast %19 : vector<256x4xf32> to vector<1x16x16x4xf32>
    %c0_22 = arith.constant 0 : index
    %c0_23 = arith.constant 0 : index
    %c0_24 = arith.constant 0 : index
    %c0_25 = arith.constant 0 : index
    %21 = vector.load %arg4[%c0_22, %c0_23, %c0_24, %c0_25] : memref<1x16x16x4xf32, #tpu.memory_space<vmem>>, vector<1x16x16x4xf32>
    tpu.vector_store %arg4[%c0_22, %c0_23, %c0_24, %c0_25], %20 {strides = array<i32>} : memref<1x16x16x4xf32, #tpu.memory_space<vmem>>, vector<1x16x16x4xf32>,
    return
  }
  func.func @transform_0(%arg0: i32) -> (i32, i32, i32, i32) {
    %c0_i32 = arith.constant 0 : i32
    %c0_i32_0 = arith.constant 0 : i32
    %c0_i32_1 = arith.constant 0 : i32
    %c0_i32_2 = arith.constant 0 : i32
    return %arg0, %c0_i32, %c0_i32_0, %c0_i32_1 : i32, i32, i32, i32
  }
  func.func @transform_1(%arg0: i32) -> (i32, i32, i32) {
    %c0_i32 = arith.constant 0 : i32
    %c0_i32_0 = arith.constant 0 : i32
    %c0_i32_1 = arith.constant 0 : i32
    %c0_i32_2 = arith.constant 0 : i32
    return %c0_i32, %c0_i32_0, %c0_i32_1 : i32, i32, i32
  }
  func.func @transform_2(%arg0: i32) -> (i32, i32) {
    %c0_i32 = arith.constant 0 : i32
    %c0_i32_0 = arith.constant 0 : i32
    %c0_i32_1 = arith.constant 0 : i32
    return %c0_i32, %c0_i32_0 : i32, i32
  }
  func.func @transform_3(%arg0: i32) -> (i32, i32, i32, i32) {
    %c0_i32 = arith.constant 0 : i32
    %c0_i32_0 = arith.constant 0 : i32
    %c0_i32_1 = arith.constant 0 : i32
    %c0_i32_2 = arith.constant 0 : i32
    return %arg0, %c0_i32, %c0_i32_0, %c0_i32_1 : i32, i32, i32, i32
  }
}

</mosaic_0001>

<llo_original>
// kernel: tpu_custom_call.1
$region0: #{tpu_custom_call.1}
  #allocation0 [shape = 'u32[]', space=smem, size = 0x4, offset = 0x4, fixed_abs, tag = 'smem constant byte address 0x4 - core index']
  #allocation1 [shape = 'u32[144,128]{1,0:T(1,128)}', space=vmem, size = 0x12000, scoped, tag = 'internal scratch']
  %s0 = inlined_call_operand.vmem [shape: f32[2,18,16,12], index: 0, kind: input, shape index: {}]
  %s1 = inlined_call_operand.vmem [shape: f32[3,12,4], index: 1, kind: input, shape index: {}]
  %s2 = inlined_call_operand.vmem [shape: f32[1,4], index: 2, kind: input, shape index: {}]
  %s3 = inlined_call_operand.vmem [shape: f32[2,16,16,4], index: 3, kind: output, shape index: {}]
  %s4 = sld [smem:[#allocation0]]
  $region45: #{tpu_custom_call.1} parent=0
    _
  %s6 = ssub.s32 1, %s4
  %s7 = scalar_select 0, %s6, %s4
  loop: start=0, step=1, limit=4
  $region2: #{tpu_custom_call.1} parent=0 // loop_pre_header
    _
  $region3: #{tpu_custom_call.1} parent=0 // loop_header
    %s9 = sphi 0, %s13
    %p10 = scmp.ge.s32.totalorder %s9, 4
    %s19 = sphi 0, %s21
    %s22 = sphi 0, %s19
    %s23 = sphi 0, %s22
    %s39 = sphi 0, %s23
    %s43 = sphi 0, %s43
    %s45 = sphi 0, %s43
    %s46 = sphi 0, %s45
    %s60 = sphi 0, %s46
    %s64 = sphi 0, %s64
    %s66 = sphi 0, %s64
    %s67 = sphi 0, %s66
    %s81 = sphi 0, %s67
    %s87 = sphi 0, %s89
    %s90 = sphi 0, %s87
    %s91 = sphi 0, %s90
    %s107 = sphi 0, %s91
  $region4: #{tpu_custom_call.1} parent=0 // loop_header_branch
    %12 = sbr.rel (%p10) target = $region8
  $region5: #{tpu_custom_call.1} parent=0 // loop_body
    %s14 = ssub.s32 %s9, 1
    %s15 = ssub.s32 %s9, 2
    %s16 = sadd.s32 %s9, 1
    %s17 = ssub.s32 %s9, %s16
    %p18 = scmp.eq.s32.totalorder %s17, 0
    %s20 = sadd.s32 %s19, 1
    %s21 = scalar_select %p18, %s19, %s20
    %p24 = pneg %p18
    %p25 = scmp.eq.s32.totalorder %s9, 1
    %p26 = por %p24, %p25
    %p27 = scmp.ne.s32.totalorder %s19, %s22
    %p28 = scmp.eq.s32.totalorder %s9, 0
    %p29 = por %p27, %p28
    %p30 = scmp.ne.s32.totalorder %s19, %s22
    %p31 = scmp.eq.s32.totalorder %s14, 1
    %p32 = por %p30, %p31
    %p33 = scmp.ne.s32.totalorder %s22, %s23
    %p34 = scmp.eq.s32.totalorder %s14, 0
    %p35 = por %p33, %p34
    %p36 = scmp.ne.s32.totalorder %s22, %s23
    %p37 = scmp.eq.s32.totalorder %s15, 1
    %p38 = por %p36, %p37
    %p40 = scmp.ne.s32.totalorder %s23, %s39
    %p41 = scmp.eq.s32.totalorder %s15, 0
    %p42 = por %p40, %p41
    %s44 = sadd.s32 %s43, 1
    %p47 = scmp.eq.s32.totalorder %s9, 1
    %p48 = scmp.ne.s32.totalorder %s43, %s45
    %p49 = scmp.eq.s32.totalorder %s9, 0
    %p50 = por %p48, %p49
    %p51 = scmp.ne.s32.totalorder %s43, %s45
    %p52 = scmp.eq.s32.totalorder %s14, 1
    %p53 = por %p51, %p52
    %p54 = scmp.ne.s32.totalorder %s45, %s46
    %p55 = scmp.eq.s32.totalorder %s14, 0
    %p56 = por %p54, %p55
    %p57 = scmp.ne.s32.totalorder %s45, %s46
    %p58 = scmp.eq.s32.totalorder %s15, 1
    %p59 = por %p57, %p58
    %p61 = scmp.ne.s32.totalorder %s46, %s60
    %p62 = scmp.eq.s32.totalorder %s15, 0
    %p63 = por %p61, %p62
    %s65 = sadd.s32 %s64, 1
    %p68 = scmp.eq.s32.totalorder %s9, 1
    %p69 = scmp.ne.s32.totalorder %s64, %s66
    %p70 = scmp.eq.s32.totalorder %s9, 0
    %p71 = por %p69, %p70
    %p72 = scmp.ne.s32.totalorder %s64, %s66
    %p73 = scmp.eq.s32.totalorder %s14, 1
    %p74 = por %p72, %p73
    %p75 = scmp.ne.s32.totalorder %s66, %s67
    %p76 = scmp.eq.s32.totalorder %s14, 0
    %p77 = por %p75, %p76
    %p78 = scmp.ne.s32.totalorder %s66, %s67
    %p79 = scmp.eq.s32.totalorder %s15, 1
    %p80 = por %p78, %p79
    %p82 = scmp.ne.s32.totalorder %s67, %s81
    %p83 = scmp.eq.s32.totalorder %s15, 0
    %p84 = por %p82, %p83
    %s85 = ssub.s32 %s9, %s16
    %p86 = scmp.eq.s32.totalorder %s85, 0
    %s88 = sadd.s32 %s87, 1
    %s89 = scalar_select %p86, %s87, %s88
    %p92 = pneg %p86
    %p93 = scmp.eq.s32.totalorder %s9, 1
    %p94 = por %p92, %p93
    %p95 = scmp.ne.s32.totalorder %s87, %s90
    %p96 = scmp.eq.s32.totalorder %s9, 0
    %p97 = por %p95, %p96
    %p98 = scmp.ne.s32.totalorder %s87, %s90
    %p99 = scmp.eq.s32.totalorder %s14, 1
    %p100 = por %p98, %p99
    %p101 = scmp.ne.s32.totalorder %s90, %s91
    %p102 = scmp.eq.s32.totalorder %s14, 0
    %p103 = por %p101, %p102
    %p104 = scmp.ne.s32.totalorder %s90, %s91
    %p105 = scmp.eq.s32.totalorder %s15, 1
    %p106 = por %p104, %p105
    %p108 = scmp.ne.s32.totalorder %s91, %s107
    %p109 = scmp.eq.s32.totalorder %s15, 0
    %p110 = por %p108, %p109
    %p111 = scmp.le.s32.totalorder 1, %s9
    %p112 = scmp.lt.s32.totalorder %s9, 3
    %p113 = pnand %p111, %p112
    %p114 = pneg %p113
    // Predicated region
    $region9: #{tpu_custom_call.1} parent=5 // pred_check
      _
    $region10: #{tpu_custom_call.1} parent=5 // pred_check_branch
      %116 = sbr.rel (%p113) target = $region12
    $region11: #{tpu_custom_call.1} parent=5 // pred_region
      %s117 = ssub.s32 %s9, 1
      // Predicated region
      $region13: #{tpu_custom_call.1} parent=11 // pred_check
        %p118 = pneg %p56
      $region14: #{tpu_custom_call.1} parent=11 // pred_check_branch
        %120 = sbr.rel (%p118) target = $region16
      $region15: #{tpu_custom_call.1} parent=11 // pred_region
        _
      $region16: #{tpu_custom_call.1} parent=11 // pred_fallthru
        _
      // Predicated region
      $region17: #{tpu_custom_call.1} parent=11 // pred_check
        %p121 = pneg %p77
      $region18: #{tpu_custom_call.1} parent=11 // pred_check_branch
        %123 = sbr.rel (%p121) target = $region20
      $region19: #{tpu_custom_call.1} parent=11 // pred_region
        _
      $region20: #{tpu_custom_call.1} parent=11 // pred_fallthru
        _
    $region12: #{tpu_custom_call.1} parent=5 // pred_fallthru
      _
    %p124 = scmp.lt.s32.totalorder %s9, 2
    // Predicated region
    $region21: #{tpu_custom_call.1} parent=5 // pred_check
      %p125 = pneg %p124
    $region22: #{tpu_custom_call.1} parent=5 // pred_check_branch
      %127 = sbr.rel (%p125) target = $region24
    $region23: #{tpu_custom_call.1} parent=5 // pred_region
      // Predicated region
      $region25: #{tpu_custom_call.1} parent=23 // pred_check
        %p128 = pneg %p29
      $region26: #{tpu_custom_call.1} parent=23 // pred_check_branch
        %130 = sbr.rel (%p128) target = $region28
      $region27: #{tpu_custom_call.1} parent=23 // pred_region
        %p131 = scmp.lt.s32.totalorder %s9, 1
        %s132 = scalar_select %p131, %s9, 1
        %s133 = smul.addr %s132, 36
        %s134 = smul.addr %s133, 8
        %s135 = scalar_lea.vmem %s0, %s134
      $region28: #{tpu_custom_call.1} parent=23 // pred_fallthru
        _
    $region24: #{tpu_custom_call.1} parent=5 // pred_fallthru
      _
    %p136 = scmp.le.s32.totalorder 1, %s9
    %p137 = scmp.lt.s32.totalorder %s9, 3
    %p138 = pnand %p136, %p137
    %p139 = pneg %p138
    // Predicated region
    $region29: #{tpu_custom_call.1} parent=5 // pred_check
      _
    $region30: #{tpu_custom_call.1} parent=5 // pred_check_branch
      %141 = sbr.rel (%p138) target = $region32
    $region31: #{tpu_custom_call.1} parent=5 // pred_region
      %s142 = ssub.s32 %s9, 1
      %p143 = scmp.lt.s32.totalorder %s14, 1
      %s144 = scalar_select %p143, %s14, 1
      %s145 = smul.addr %s144, 36
      %s146 = smul.addr %s145, 8
      %s147 = scalar_lea.vmem %s0, %s146
      %p148 = pneg %p35
      %p149 = pneg %p32
      %p150 = pneg %p56
      %p151 = pneg %p53
      %p152 = pneg %p77
      %p153 = pneg %p74
      %p154 = pneg %p103
      %p155 = pneg %p100
      %p156 = scmp.lt.s32.totalorder %s14, 1
      %s157 = scalar_select %p156, %s14, 1
      %s158 = smul.addr %s157, 32
      %s159 = smul.addr %s158, 8
      %s160 = scalar_lea.vmem %s3, %s159
      %p161 = scmp.lt.s32.totalorder %s14, 1
      %s162 = scalar_select %p161, %s14, 1
      %s163 = smul.addr %s162, 36
      %s164 = smul.addr %s163, 8
      %s165 = scalar_lea.vmem %s0, %s164
      %p166 = scmp.lt.s32.totalorder %s14, 1
      %s167 = scalar_select %p166, %s14, 1
      %s168 = smul.addr %s167, 32
      %s169 = smul.addr %s168, 8
      %s170 = scalar_lea.vmem %s3, %s169
      %v171 = vld [vmem:[%s165] sm:$0xff]
      %v172 = vld [vmem:[%s165 + $0x8] sm:$0xff]
      %v173 = vld [vmem:[%s165 + $0x10] sm:$0xff]
      %v174 = vld [vmem:[%s165 + $0x18] sm:$0xff]
      %v175 = vld [vmem:[%s165 + $0x20] sm:$0xff]
      %v176 = vld [vmem:[%s165 + $0x28] sm:$0xff]
      %v177 = vld [vmem:[%s165 + $0x30] sm:$0xff]
      %v178 = vld [vmem:[%s165 + $0x38] sm:$0xff]
      %v179 = vld [vmem:[%s165 + $0x40] sm:$0xff]
      %v180 = vld [vmem:[%s165 + $0x48] sm:$0xff]
      %v181 = vld [vmem:[%s165 + $0x50] sm:$0xff]
      %v182 = vld [vmem:[%s165 + $0x58] sm:$0xff]
      %v183 = vld [vmem:[%s165 + $0x60] sm:$0xff]
      %v184 = vld [vmem:[%s165 + $0x68] sm:$0xff]
      %v185 = vld [vmem:[%s165 + $0x70] sm:$0xff]
      %v186 = vld [vmem:[%s165 + $0x78] sm:$0xff]
      %v187 = vld [vmem:[%s165 + $0x80] sm:$0xff]
      %v188 = vld [vmem:[%s165 + $0x88] sm:$0xff]
      %v189 = vld [vmem:[%s165 + $0x90] sm:$0xff]
      %v190 = vld [vmem:[%s165 + $0x98] sm:$0xff]
      %v191 = vld [vmem:[%s165 + $0xa0] sm:$0xff]
      %v192 = vld [vmem:[%s165 + $0xa8] sm:$0xff]
      %v193 = vld [vmem:[%s165 + $0xb0] sm:$0xff]
      %v194 = vld [vmem:[%s165 + $0xb8] sm:$0xff]
      %v195 = vld [vmem:[%s165 + $0xc0] sm:$0xff]
      %v196 = vld [vmem:[%s165 + $0xc8] sm:$0xff]
      %v197 = vld [vmem:[%s165 + $0xd0] sm:$0xff]
      %v198 = vld [vmem:[%s165 + $0xd8] sm:$0xff]
      %v199 = vld [vmem:[%s165 + $0xe0] sm:$0xff]
      %v200 = vld [vmem:[%s165 + $0xe8] sm:$0xff]
      %v201 = vld [vmem:[%s165 + $0xf0] sm:$0xff]
      %v202 = vld [vmem:[%s165 + $0xf8] sm:$0xff]
      %v203 = vld [vmem:[%s1] sm:$0xff]
      %v204 = vld [vmem:[%s1 + $0x8] sm:$0xf]
      %s205 = scalar_lea.vmem %s165, 16
      %v206 = vld [vmem:[%s205] sm:$0xff]
      %v207 = vld [vmem:[%s205 + $0x8] sm:$0xff]
      %v208 = vld [vmem:[%s205 + $0x10] sm:$0xff]
      %v209 = vld [vmem:[%s205 + $0x18] sm:$0xff]
      %v210 = vld [vmem:[%s205 + $0x20] sm:$0xff]
      %v211 = vld [vmem:[%s205 + $0x28] sm:$0xff]
      %v212 = vld [vmem:[%s205 + $0x30] sm:$0xff]
      %v213 = vld [vmem:[%s205 + $0x38] sm:$0xff]
      %v214 = vld [vmem:[%s205 + $0x40] sm:$0xff]
      %v215 = vld [vmem:[%s205 + $0x48] sm:$0xff]
      %v216 = vld [vmem:[%s205 + $0x50] sm:$0xff]
      %v217 = vld [vmem:[%s205 + $0x58] sm:$0xff]
      %v218 = vld [vmem:[%s205 + $0x60] sm:$0xff]
      %v219 = vld [vmem:[%s205 + $0x68] sm:$0xff]
      %v220 = vld [vmem:[%s205 + $0x70] sm:$0xff]
      %v221 = vld [vmem:[%s205 + $0x78] sm:$0xff]
      %v222 = vld [vmem:[%s205 + $0x80] sm:$0xff]
      %v223 = vld [vmem:[%s205 + $0x88] sm:$0xff]
      %v224 = vld [vmem:[%s205 + $0x90] sm:$0xff]
      %v225 = vld [vmem:[%s205 + $0x98] sm:$0xff]
      %v226 = vld [vmem:[%s205 + $0xa0] sm:$0xff]
      %v227 = vld [vmem:[%s205 + $0xa8] sm:$0xff]
      %v228 = vld [vmem:[%s205 + $0xb0] sm:$0xff]
      %v229 = vld [vmem:[%s205 + $0xb8] sm:$0xff]
      %v230 = vld [vmem:[%s205 + $0xc0] sm:$0xff]
      %v231 = vld [vmem:[%s205 + $0xc8] sm:$0xff]
      %v232 = vld [vmem:[%s205 + $0xd0] sm:$0xff]
      %v233 = vld [vmem:[%s205 + $0xd8] sm:$0xff]
      %v234 = vld [vmem:[%s205 + $0xe0] sm:$0xff]
      %v235 = vld [vmem:[%s205 + $0xe8] sm:$0xff]
      %v236 = vld [vmem:[%s205 + $0xf0] sm:$0xff]
      %v237 = vld [vmem:[%s205 + $0xf8] sm:$0xff]
      %s238 = scalar_lea.vmem %s1, 16
      %v239 = vld [vmem:[%s238] sm:$0xff]
      %v240 = vld [vmem:[%s238 + $0x8] sm:$0xf]
      %vm241 = vcmask 97280
      %v243 = vsel %vm241, %v206, 0
      %v246 = vsel %vm241, %v207, 0
      %v249 = vsel %vm241, %v208, 0
      %v252 = vsel %vm241, %v209, 0
      %v255 = vsel %vm241, %v210, 0
      %v258 = vsel %vm241, %v211, 0
      %v261 = vsel %vm241, %v212, 0
      %v264 = vsel %vm241, %v213, 0
      %v267 = vsel %vm241, %v214, 0
      %v270 = vsel %vm241, %v215, 0
      %v273 = vsel %vm241, %v216, 0
      %v276 = vsel %vm241, %v217, 0
      %v279 = vsel %vm241, %v218, 0
      %v282 = vsel %vm241, %v219, 0
      %v285 = vsel %vm241, %v220, 0
      %v288 = vsel %vm241, %v221, 0
      %v291 = vsel %vm241, %v222, 0
      %v294 = vsel %vm241, %v223, 0
      %v297 = vsel %vm241, %v224, 0
      %v300 = vsel %vm241, %v225, 0
      %v303 = vsel %vm241, %v226, 0
      %v306 = vsel %vm241, %v227, 0
      %v309 = vsel %vm241, %v228, 0
      %v312 = vsel %vm241, %v229, 0
      %v315 = vsel %vm241, %v230, 0
      %v318 = vsel %vm241, %v231, 0
      %v321 = vsel %vm241, %v232, 0
      %v324 = vsel %vm241, %v233, 0
      %v327 = vsel %vm241, %v234, 0
      %v330 = vsel %vm241, %v235, 0
      %v333 = vsel %vm241, %v236, 0
      %v336 = vsel %vm241, %v237, 0
      %vm338 = vcmask 1043456
      %v340 = vsel %vm338, %v240, 0
      %342 = vmatprep.subr.mxu0 0.0
      %343 = vmatpush1.msra.mxu0 0.0
      %344 = vmatprep.subr.mxu0 0.0
      %345 = vmatpush1.msra.mxu0 0.0
      %346 = vmatprep.subr.mxu0 0.0
      %347 = vmatpush1.msra.mxu0 0.0
      %348 = vmatprep.subr.mxu0 0.0
      %349 = vmatpush1.msra.mxu0 0.0
      %350 = vmatprep.subr.mxu0 0.0
      %351 = vmatpush1.msra.mxu0 0.0
      %352 = vmatprep.subr.mxu0 0.0
      %353 = vmatpush1.msra.mxu0 0.0
      %354 = vmatprep.subr.mxu0 0.0
      %355 = vmatpush1.msra.mxu0 0.0
      %356 = vmatprep.subr.mxu0 0.0
      %357 = vmatpush1.msra.mxu0 0.0
      %358 = vmatprep.subr.mxu0 0.0
      %359 = vmatpush1.msra.mxu0 0.0
      %360 = vmatprep.subr.mxu0 0.0
      %361 = vmatpush1.msra.mxu0 0.0
      %362 = vmatprep.subr.mxu0 0.0
      %363 = vmatpush1.msra.mxu0 0.0
      %364 = vmatprep.subr.mxu0 0.0
      %365 = vmatpush1.msra.mxu0 0.0
      %366 = vmatprep.subr.mxu0 0.0
      %367 = vmatpush1.msra.mxu0 0.0
      %368 = vmatprep.subr.mxu0 0.0
      %369 = vmatpush1.msra.mxu0 0.0
      %370 = vmatprep.subr.mxu0 0.0
      %371 = vmatpush1.msra.mxu0 %v340
      %372 = vmatprep.subr.mxu0 0.0
      %373 = vmatpush1.msra.mxu0 %v239
      %374 = vmatprep.subr.mxu0 0.0
      %375 = vmatpush2.msra.mxu0 0.0
      %376 = vmatprep.subr.mxu0 0.0
      %377 = vmatpush2.msra.mxu0 0.0
      %378 = vmatprep.subr.mxu0 0.0
      %379 = vmatpush2.msra.mxu0 0.0
      %380 = vmatprep.subr.mxu0 0.0
      %381 = vmatpush2.msra.mxu0 0.0
      %382 = vmatprep.subr.mxu0 0.0
      %383 = vmatpush2.msra.mxu0 0.0
      %384 = vmatprep.subr.mxu0 0.0
      %385 = vmatpush2.msra.mxu0 0.0
      %386 = vmatprep.subr.mxu0 0.0
      %387 = vmatpush2.msra.mxu0 0.0
      %388 = vmatprep.subr.mxu0 0.0
      %389 = vmatpush2.msra.mxu0 0.0
      %390 = vmatprep.subr.mxu0 0.0
      %391 = vmatpush2.msra.mxu0 0.0
      %392 = vmatprep.subr.mxu0 0.0
      %393 = vmatpush2.msra.mxu0 0.0
      %394 = vmatprep.subr.mxu0 0.0
      %395 = vmatpush2.msra.mxu0 0.0
      %396 = vmatprep.subr.mxu0 0.0
      %397 = vmatpush2.msra.mxu0 0.0
      %398 = vmatprep.subr.mxu0 0.0
      %399 = vmatpush2.msra.mxu0 0.0
      %400 = vmatprep.subr.mxu0 0.0
      %401 = vmatpush2.msra.mxu0 0.0
      %402 = vmatprep.subr.mxu0 0.0
      %403 = vmatpush2.msra.mxu0 0.0
      %404 = vmatprep.subr.mxu0 0.0
      %405 = vmatpush2.msra.mxu0 0.0
      %406 = vmatprep.mubr.f32.mxu0 0.0
      %407 = vmatmul.mubr.f32.gmra.mxu0 %v243
      %v408 = vpop.f32.mrf.mxu0
      %v409 = vadd.f32 0.0, %v408
      %v410 = vpop.f32.mrf.mxu0
      %411 = vmatprep.mubr.f32.mxu0 0.0
      %412 = vmatmul.mubr.f32.gmra.mxu0 %v246
      %v413 = vpop.f32.mrf.mxu0
      %v414 = vadd.f32 0.0, %v413
      %v415 = vpop.f32.mrf.mxu0
      %416 = vmatprep.mubr.f32.mxu0 0.0
      %417 = vmatmul.mubr.f32.gmra.mxu0 %v249
      %v418 = vpop.f32.mrf.mxu0
      %v419 = vadd.f32 0.0, %v418
      %v420 = vpop.f32.mrf.mxu0
      %421 = vmatprep.mubr.f32.mxu0 0.0
      %422 = vmatmul.mubr.f32.gmra.mxu0 %v252
      %v423 = vpop.f32.mrf.mxu0
      %v424 = vadd.f32 0.0, %v423
      %v425 = vpop.f32.mrf.mxu0
      %426 = vmatprep.mubr.f32.mxu0 0.0
      %427 = vmatmul.mubr.f32.gmra.mxu0 %v255
      %v428 = vpop.f32.mrf.mxu0
      %v429 = vadd.f32 0.0, %v428
      %v430 = vpop.f32.mrf.mxu0
      %431 = vmatprep.mubr.f32.mxu0 0.0
      %432 = vmatmul.mubr.f32.gmra.mxu0 %v258
      %v433 = vpop.f32.mrf.mxu0
      %v434 = vadd.f32 0.0, %v433
      %v435 = vpop.f32.mrf.mxu0
      %436 = vmatprep.mubr.f32.mxu0 0.0
      %437 = vmatmul.mubr.f32.gmra.mxu0 %v261
      %v438 = vpop.f32.mrf.mxu0
      %v439 = vadd.f32 0.0, %v438
      %v440 = vpop.f32.mrf.mxu0
      %441 = vmatprep.mubr.f32.mxu0 0.0
      %442 = vmatmul.mubr.f32.gmra.mxu0 %v264
      %v443 = vpop.f32.mrf.mxu0
      %v444 = vadd.f32 0.0, %v443
      %v445 = vpop.f32.mrf.mxu0
      %446 = vmatprep.mubr.f32.mxu0 0.0
      %447 = vmatmul.mubr.f32.gmra.mxu0 %v267
      %v448 = vpop.f32.mrf.mxu0
      %v449 = vadd.f32 0.0, %v448
      %v450 = vpop.f32.mrf.mxu0
      %451 = vmatprep.mubr.f32.mxu0 0.0
      %452 = vmatmul.mubr.f32.gmra.mxu0 %v270
      %v453 = vpop.f32.mrf.mxu0
      %v454 = vadd.f32 0.0, %v453
      %v455 = vpop.f32.mrf.mxu0
      %456 = vmatprep.mubr.f32.mxu0 0.0
      %457 = vmatmul.mubr.f32.gmra.mxu0 %v273
      %v458 = vpop.f32.mrf.mxu0
      %v459 = vadd.f32 0.0, %v458
      %v460 = vpop.f32.mrf.mxu0
      %461 = vmatprep.mubr.f32.mxu0 0.0
      %462 = vmatmul.mubr.f32.gmra.mxu0 %v276
      %v463 = vpop.f32.mrf.mxu0
      %v464 = vadd.f32 0.0, %v463
      %v465 = vpop.f32.mrf.mxu0
      %466 = vmatprep.mubr.f32.mxu0 0.0
      %467 = vmatmul.mubr.f32.gmra.mxu0 %v279
      %v468 = vpop.f32.mrf.mxu0
      %v469 = vadd.f32 0.0, %v468
      %v470 = vpop.f32.mrf.mxu0
      %471 = vmatprep.mubr.f32.mxu0 0.0
      %472 = vmatmul.mubr.f32.gmra.mxu0 %v282
      %v473 = vpop.f32.mrf.mxu0
      %v474 = vadd.f32 0.0, %v473
      %v475 = vpop.f32.mrf.mxu0
      %476 = vmatprep.mubr.f32.mxu0 0.0
      %477 = vmatmul.mubr.f32.gmra.mxu0 %v285
      %v478 = vpop.f32.mrf.mxu0
      %v479 = vadd.f32 0.0, %v478
      %v480 = vpop.f32.mrf.mxu0
      %481 = vmatprep.mubr.f32.mxu0 0.0
      %482 = vmatmul.mubr.f32.gmra.mxu0 %v288
      %v483 = vpop.f32.mrf.mxu0
      %v484 = vadd.f32 0.0, %v483
      %v485 = vpop.f32.mrf.mxu0
      %486 = vmatprep.mubr.f32.mxu0 0.0
      %487 = vmatmul.mubr.f32.gmra.mxu0 %v291
      %v488 = vpop.f32.mrf.mxu0
      %v489 = vadd.f32 0.0, %v488
      %v490 = vpop.f32.mrf.mxu0
      %491 = vmatprep.mubr.f32.mxu0 0.0
      %492 = vmatmul.mubr.f32.gmra.mxu0 %v294
      %v493 = vpop.f32.mrf.mxu0
      %v494 = vadd.f32 0.0, %v493
      %v495 = vpop.f32.mrf.mxu0
      %496 = vmatprep.mubr.f32.mxu0 0.0
      %497 = vmatmul.mubr.f32.gmra.mxu0 %v297
      %v498 = vpop.f32.mrf.mxu0
      %v499 = vadd.f32 0.0, %v498
      %v500 = vpop.f32.mrf.mxu0
      %501 = vmatprep.mubr.f32.mxu0 0.0
      %502 = vmatmul.mubr.f32.gmra.mxu0 %v300
      %v503 = vpop.f32.mrf.mxu0
      %v504 = vadd.f32 0.0, %v503
      %v505 = vpop.f32.mrf.mxu0
      %506 = vmatprep.mubr.f32.mxu0 0.0
      %507 = vmatmul.mubr.f32.gmra.mxu0 %v303
      %v508 = vpop.f32.mrf.mxu0
      %v509 = vadd.f32 0.0, %v508
      %v510 = vpop.f32.mrf.mxu0
      %511 = vmatprep.mubr.f32.mxu0 0.0
      %512 = vmatmul.mubr.f32.gmra.mxu0 %v306
      %v513 = vpop.f32.mrf.mxu0
      %v514 = vadd.f32 0.0, %v513
      %v515 = vpop.f32.mrf.mxu0
      %516 = vmatprep.mubr.f32.mxu0 0.0
      %517 = vmatmul.mubr.f32.gmra.mxu0 %v309
      %v518 = vpop.f32.mrf.mxu0
      %v519 = vadd.f32 0.0, %v518
      %v520 = vpop.f32.mrf.mxu0
      %521 = vmatprep.mubr.f32.mxu0 0.0
      %522 = vmatmul.mubr.f32.gmra.mxu0 %v312
      %v523 = vpop.f32.mrf.mxu0
      %v524 = vadd.f32 0.0, %v523
      %v525 = vpop.f32.mrf.mxu0
      %526 = vmatprep.mubr.f32.mxu0 0.0
      %527 = vmatmul.mubr.f32.gmra.mxu0 %v315
      %v528 = vpop.f32.mrf.mxu0
      %v529 = vadd.f32 0.0, %v528
      %v530 = vpop.f32.mrf.mxu0
      %531 = vmatprep.mubr.f32.mxu0 0.0
      %532 = vmatmul.mubr.f32.gmra.mxu0 %v318
      %v533 = vpop.f32.mrf.mxu0
      %v534 = vadd.f32 0.0, %v533
      %v535 = vpop.f32.mrf.mxu0
      %536 = vmatprep.mubr.f32.mxu0 0.0
      %537 = vmatmul.mubr.f32.gmra.mxu0 %v321
      %v538 = vpop.f32.mrf.mxu0
      %v539 = vadd.f32 0.0, %v538
      %v540 = vpop.f32.mrf.mxu0
      %541 = vmatprep.mubr.f32.mxu0 0.0
      %542 = vmatmul.mubr.f32.gmra.mxu0 %v324
      %v543 = vpop.f32.mrf.mxu0
      %v544 = vadd.f32 0.0, %v543
      %v545 = vpop.f32.mrf.mxu0
      %546 = vmatprep.mubr.f32.mxu0 0.0
      %547 = vmatmul.mubr.f32.gmra.mxu0 %v327
      %v548 = vpop.f32.mrf.mxu0
      %v549 = vadd.f32 0.0, %v548
      %v550 = vpop.f32.mrf.mxu0
      %551 = vmatprep.mubr.f32.mxu0 0.0
      %552 = vmatmul.mubr.f32.gmra.mxu0 %v330
      %v553 = vpop.f32.mrf.mxu0
      %v554 = vadd.f32 0.0, %v553
      %v555 = vpop.f32.mrf.mxu0
      %556 = vmatprep.mubr.f32.mxu0 0.0
      %557 = vmatmul.mubr.f32.gmra.mxu0 %v333
      %v558 = vpop.f32.mrf.mxu0
      %v559 = vadd.f32 0.0, %v558
      %v560 = vpop.f32.mrf.mxu0
      %561 = vmatprep.mubr.f32.mxu0 0.0
      %562 = vmatmul.mubr.f32.gmra.mxu0 %v336
      %v563 = vpop.f32.mrf.mxu0
      %v564 = vadd.f32 0.0, %v563
      %v565 = vpop.f32.mrf.mxu0
      %566 = vdwg.mxu0
      %v568 = vsel %vm241, %v171, 0
      %v571 = vsel %vm241, %v172, 0
      %v574 = vsel %vm241, %v173, 0
      %v577 = vsel %vm241, %v174, 0
      %v580 = vsel %vm241, %v175, 0
      %v583 = vsel %vm241, %v176, 0
      %v586 = vsel %vm241, %v177, 0
      %v589 = vsel %vm241, %v178, 0
      %v592 = vsel %vm241, %v179, 0
      %v595 = vsel %vm241, %v180, 0
      %v598 = vsel %vm241, %v181, 0
      %v601 = vsel %vm241, %v182, 0
      %v604 = vsel %vm241, %v183, 0
      %v607 = vsel %vm241, %v184, 0
      %v610 = vsel %vm241, %v185, 0
      %v613 = vsel %vm241, %v186, 0
      %v616 = vsel %vm241, %v187, 0
      %v619 = vsel %vm241, %v188, 0
      %v622 = vsel %vm241, %v189, 0
      %v625 = vsel %vm241, %v190, 0
      %v628 = vsel %vm241, %v191, 0
      %v631 = vsel %vm241, %v192, 0
      %v634 = vsel %vm241, %v193, 0
      %v637 = vsel %vm241, %v194, 0
      %v640 = vsel %vm241, %v195, 0
      %v643 = vsel %vm241, %v196, 0
      %v646 = vsel %vm241, %v197, 0
      %v649 = vsel %vm241, %v198, 0
      %v652 = vsel %vm241, %v199, 0
      %v655 = vsel %vm241, %v200, 0
      %v658 = vsel %vm241, %v201, 0
      %v661 = vsel %vm241, %v202, 0
      %v664 = vsel %vm338, %v204, 0
      %666 = vmatprep.subr.mxu0 0.0
      %667 = vmatpush1.msra.mxu0 0.0
      %668 = vmatprep.subr.mxu0 0.0
      %669 = vmatpush1.msra.mxu0 0.0
      %670 = vmatprep.subr.mxu0 0.0
      %671 = vmatpush1.msra.mxu0 0.0
      %672 = vmatprep.subr.mxu0 0.0
      %673 = vmatpush1.msra.mxu0 0.0
      %674 = vmatprep.subr.mxu0 0.0
      %675 = vmatpush1.msra.mxu0 0.0
      %676 = vmatprep.subr.mxu0 0.0
      %677 = vmatpush1.msra.mxu0 0.0
      %678 = vmatprep.subr.mxu0 0.0
      %679 = vmatpush1.msra.mxu0 0.0
      %680 = vmatprep.subr.mxu0 0.0
      %681 = vmatpush1.msra.mxu0 0.0
      %682 = vmatprep.subr.mxu0 0.0
      %683 = vmatpush1.msra.mxu0 0.0
      %684 = vmatprep.subr.mxu0 0.0
      %685 = vmatpush1.msra.mxu0 0.0
      %686 = vmatprep.subr.mxu0 0.0
      %687 = vmatpush1.msra.mxu0 0.0
      %688 = vmatprep.subr.mxu0 0.0
      %689 = vmatpush1.msra.mxu0 0.0
      %690 = vmatprep.subr.mxu0 0.0
      %691 = vmatpush1.msra.mxu0 0.0
      %692 = vmatprep.subr.mxu0 0.0
      %693 = vmatpush1.msra.mxu0 0.0
      %694 = vmatprep.subr.mxu0 0.0
      %695 = vmatpush1.msra.mxu0 %v664
      %696 = vmatprep.subr.mxu0 0.0
      %697 = vmatpush1.msra.mxu0 %v203
      %698 = vmatprep.subr.mxu0 0.0
      %699 = vmatpush2.msra.mxu0 0.0
      %700 = vmatprep.subr.mxu0 0.0
      %701 = vmatpush2.msra.mxu0 0.0
      %702 = vmatprep.subr.mxu0 0.0
      %703 = vmatpush2.msra.mxu0 0.0
      %704 = vmatprep.subr.mxu0 0.0
      %705 = vmatpush2.msra.mxu0 0.0
      %706 = vmatprep.subr.mxu0 0.0
      %707 = vmatpush2.msra.mxu0 0.0
      %708 = vmatprep.subr.mxu0 0.0
      %709 = vmatpush2.msra.mxu0 0.0
      %710 = vmatprep.subr.mxu0 0.0
      %711 = vmatpush2.msra.mxu0 0.0
      %712 = vmatprep.subr.mxu0 0.0
      %713 = vmatpush2.msra.mxu0 0.0
      %714 = vmatprep.subr.mxu0 0.0
      %715 = vmatpush2.msra.mxu0 0.0
      %716 = vmatprep.subr.mxu0 0.0
      %717 = vmatpush2.msra.mxu0 0.0
      %718 = vmatprep.subr.mxu0 0.0
      %719 = vmatpush2.msra.mxu0 0.0
      %720 = vmatprep.subr.mxu0 0.0
      %721 = vmatpush2.msra.mxu0 0.0
      %722 = vmatprep.subr.mxu0 0.0
      %723 = vmatpush2.msra.mxu0 0.0
      %724 = vmatprep.subr.mxu0 0.0
      %725 = vmatpush2.msra.mxu0 0.0
      %726 = vmatprep.subr.mxu0 0.0
      %727 = vmatpush2.msra.mxu0 0.0
      %728 = vmatprep.subr.mxu0 0.0
      %729 = vmatpush2.msra.mxu0 0.0
      %730 = vmatprep.mubr.f32.mxu0 0.0
      %731 = vmatmul.mubr.f32.gmra.mxu0 %v568
      %v732 = vpop.f32.mrf.mxu0
      %v733 = vadd.f32 %v409, %v732
      %v734 = vpop.f32.mrf.mxu0
      %735 = vmatprep.mubr.f32.mxu0 0.0
      %736 = vmatmul.mubr.f32.gmra.mxu0 %v571
      %v737 = vpop.f32.mrf.mxu0
      %v738 = vadd.f32 %v414, %v737
      %v739 = vpop.f32.mrf.mxu0
      %740 = vmatprep.mubr.f32.mxu0 0.0
      %741 = vmatmul.mubr.f32.gmra.mxu0 %v574
      %v742 = vpop.f32.mrf.mxu0
      %v743 = vadd.f32 %v419, %v742
      %v744 = vpop.f32.mrf.mxu0
      %745 = vmatprep.mubr.f32.mxu0 0.0
      %746 = vmatmul.mubr.f32.gmra.mxu0 %v577
      %v747 = vpop.f32.mrf.mxu0
      %v748 = vadd.f32 %v424, %v747
      %v749 = vpop.f32.mrf.mxu0
      %750 = vmatprep.mubr.f32.mxu0 0.0
      %751 = vmatmul.mubr.f32.gmra.mxu0 %v580
      %v752 = vpop.f32.mrf.mxu0
      %v753 = vadd.f32 %v429, %v752
      %v754 = vpop.f32.mrf.mxu0
      %755 = vmatprep.mubr.f32.mxu0 0.0
      %756 = vmatmul.mubr.f32.gmra.mxu0 %v583
      %v757 = vpop.f32.mrf.mxu0
      %v758 = vadd.f32 %v434, %v757
      %v759 = vpop.f32.mrf.mxu0
      %760 = vmatprep.mubr.f32.mxu0 0.0
      %761 = vmatmul.mubr.f32.gmra.mxu0 %v586
      %v762 = vpop.f32.mrf.mxu0
      %v763 = vadd.f32 %v439, %v762
      %v764 = vpop.f32.mrf.mxu0
      %765 = vmatprep.mubr.f32.mxu0 0.0
      %766 = vmatmul.mubr.f32.gmra.mxu0 %v589
      %v767 = vpop.f32.mrf.mxu0
      %v768 = vadd.f32 %v444, %v767
      %v769 = vpop.f32.mrf.mxu0
      %770 = vmatprep.mubr.f32.mxu0 0.0
      %771 = vmatmul.mubr.f32.gmra.mxu0 %v592
      %v772 = vpop.f32.mrf.mxu0
      %v773 = vadd.f32 %v449, %v772
      %v774 = vpop.f32.mrf.mxu0
      %775 = vmatprep.mubr.f32.mxu0 0.0
      %776 = vmatmul.mubr.f32.gmra.mxu0 %v595
      %v777 = vpop.f32.mrf.mxu0
      %v778 = vadd.f32 %v454, %v777
      %v779 = vpop.f32.mrf.mxu0
      %780 = vmatprep.mubr.f32.mxu0 0.0
      %781 = vmatmul.mubr.f32.gmra.mxu0 %v598
      %v782 = vpop.f32.mrf.mxu0
      %v783 = vadd.f32 %v459, %v782
      %v784 = vpop.f32.mrf.mxu0
      %785 = vmatprep.mubr.f32.mxu0 0.0
      %786 = vmatmul.mubr.f32.gmra.mxu0 %v601
      %v787 = vpop.f32.mrf.mxu0
      %v788 = vadd.f32 %v464, %v787
      %v789 = vpop.f32.mrf.mxu0
      %790 = vmatprep.mubr.f32.mxu0 0.0
      %791 = vmatmul.mubr.f32.gmra.mxu0 %v604
      %v792 = vpop.f32.mrf.mxu0
      %v793 = vadd.f32 %v469, %v792
      %v794 = vpop.f32.mrf.mxu0
      %795 = vmatprep.mubr.f32.mxu0 0.0
      %796 = vmatmul.mubr.f32.gmra.mxu0 %v607
      %v797 = vpop.f32.mrf.mxu0
      %v798 = vadd.f32 %v474, %v797
      %v799 = vpop.f32.mrf.mxu0
      %800 = vmatprep.mubr.f32.mxu0 0.0
      %801 = vmatmul.mubr.f32.gmra.mxu0 %v610
      %v802 = vpop.f32.mrf.mxu0
      %v803 = vadd.f32 %v479, %v802
      %v804 = vpop.f32.mrf.mxu0
      %805 = vmatprep.mubr.f32.mxu0 0.0
      %806 = vmatmul.mubr.f32.gmra.mxu0 %v613
      %v807 = vpop.f32.mrf.mxu0
      %v808 = vadd.f32 %v484, %v807
      %v809 = vpop.f32.mrf.mxu0
      %810 = vmatprep.mubr.f32.mxu0 0.0
      %811 = vmatmul.mubr.f32.gmra.mxu0 %v616
      %v812 = vpop.f32.mrf.mxu0
      %v813 = vadd.f32 %v489, %v812
      %v814 = vpop.f32.mrf.mxu0
      %815 = vmatprep.mubr.f32.mxu0 0.0
      %816 = vmatmul.mubr.f32.gmra.mxu0 %v619
      %v817 = vpop.f32.mrf.mxu0
      %v818 = vadd.f32 %v494, %v817
      %v819 = vpop.f32.mrf.mxu0
      %820 = vmatprep.mubr.f32.mxu0 0.0
      %821 = vmatmul.mubr.f32.gmra.mxu0 %v622
      %v822 = vpop.f32.mrf.mxu0
      %v823 = vadd.f32 %v499, %v822
      %v824 = vpop.f32.mrf.mxu0
      %825 = vmatprep.mubr.f32.mxu0 0.0
      %826 = vmatmul.mubr.f32.gmra.mxu0 %v625
      %v827 = vpop.f32.mrf.mxu0
      %v828 = vadd.f32 %v504, %v827
      %v829 = vpop.f32.mrf.mxu0
      %830 = vmatprep.mubr.f32.mxu0 0.0
      %831 = vmatmul.mubr.f32.gmra.mxu0 %v628
      %v832 = vpop.f32.mrf.mxu0
      %v833 = vadd.f32 %v509, %v832
      %v834 = vpop.f32.mrf.mxu0
      %835 = vmatprep.mubr.f32.mxu0 0.0
      %836 = vmatmul.mubr.f32.gmra.mxu0 %v631
      %v837 = vpop.f32.mrf.mxu0
      %v838 = vadd.f32 %v514, %v837
      %v839 = vpop.f32.mrf.mxu0
      %840 = vmatprep.mubr.f32.mxu0 0.0
      %841 = vmatmul.mubr.f32.gmra.mxu0 %v634
      %v842 = vpop.f32.mrf.mxu0
      %v843 = vadd.f32 %v519, %v842
      %v844 = vpop.f32.mrf.mxu0
      %845 = vmatprep.mubr.f32.mxu0 0.0
      %846 = vmatmul.mubr.f32.gmra.mxu0 %v637
      %v847 = vpop.f32.mrf.mxu0
      %v848 = vadd.f32 %v524, %v847
      %v849 = vpop.f32.mrf.mxu0
      %850 = vmatprep.mubr.f32.mxu0 0.0
      %851 = vmatmul.mubr.f32.gmra.mxu0 %v640
      %v852 = vpop.f32.mrf.mxu0
      %v853 = vadd.f32 %v529, %v852
      %v854 = vpop.f32.mrf.mxu0
      %855 = vmatprep.mubr.f32.mxu0 0.0
      %856 = vmatmul.mubr.f32.gmra.mxu0 %v643
      %v857 = vpop.f32.mrf.mxu0
      %v858 = vadd.f32 %v534, %v857
      %v859 = vpop.f32.mrf.mxu0
      %860 = vmatprep.mubr.f32.mxu0 0.0
      %861 = vmatmul.mubr.f32.gmra.mxu0 %v646
      %v862 = vpop.f32.mrf.mxu0
      %v863 = vadd.f32 %v539, %v862
      %v864 = vpop.f32.mrf.mxu0
      %865 = vmatprep.mubr.f32.mxu0 0.0
      %866 = vmatmul.mubr.f32.gmra.mxu0 %v649
      %v867 = vpop.f32.mrf.mxu0
      %v868 = vadd.f32 %v544, %v867
      %v869 = vpop.f32.mrf.mxu0
      %870 = vmatprep.mubr.f32.mxu0 0.0
      %871 = vmatmul.mubr.f32.gmra.mxu0 %v652
      %v872 = vpop.f32.mrf.mxu0
      %v873 = vadd.f32 %v549, %v872
      %v874 = vpop.f32.mrf.mxu0
      %875 = vmatprep.mubr.f32.mxu0 0.0
      %876 = vmatmul.mubr.f32.gmra.mxu0 %v655
      %v877 = vpop.f32.mrf.mxu0
      %v878 = vadd.f32 %v554, %v877
      %v879 = vpop.f32.mrf.mxu0
      %880 = vmatprep.mubr.f32.mxu0 0.0
      %881 = vmatmul.mubr.f32.gmra.mxu0 %v658
      %v882 = vpop.f32.mrf.mxu0
      %v883 = vadd.f32 %v559, %v882
      %v884 = vpop.f32.mrf.mxu0
      %885 = vmatprep.mubr.f32.mxu0 0.0
      %886 = vmatmul.mubr.f32.gmra.mxu0 %v661
      %v887 = vpop.f32.mrf.mxu0
      %v888 = vadd.f32 %v564, %v887
      %v889 = vpop.f32.mrf.mxu0
      %890 = vdwg.mxu0
      %s891 = scalar_lea.vmem %s165, 32
      %v892 = vld [vmem:[%s891] sm:$0xff]
      %v893 = vld [vmem:[%s891 + $0x8] sm:$0xff]
      %v894 = vld [vmem:[%s891 + $0x10] sm:$0xff]
      %v895 = vld [vmem:[%s891 + $0x18] sm:$0xff]
      %v896 = vld [vmem:[%s891 + $0x20] sm:$0xff]
      %v897 = vld [vmem:[%s891 + $0x28] sm:$0xff]
      %v898 = vld [vmem:[%s891 + $0x30] sm:$0xff]
      %v899 = vld [vmem:[%s891 + $0x38] sm:$0xff]
      %v900 = vld [vmem:[%s891 + $0x40] sm:$0xff]
      %v901 = vld [vmem:[%s891 + $0x48] sm:$0xff]
      %v902 = vld [vmem:[%s891 + $0x50] sm:$0xff]
      %v903 = vld [vmem:[%s891 + $0x58] sm:$0xff]
      %v904 = vld [vmem:[%s891 + $0x60] sm:$0xff]
      %v905 = vld [vmem:[%s891 + $0x68] sm:$0xff]
      %v906 = vld [vmem:[%s891 + $0x70] sm:$0xff]
      %v907 = vld [vmem:[%s891 + $0x78] sm:$0xff]
      %v908 = vld [vmem:[%s891 + $0x80] sm:$0xff]
      %v909 = vld [vmem:[%s891 + $0x88] sm:$0xff]
      %v910 = vld [vmem:[%s891 + $0x90] sm:$0xff]
      %v911 = vld [vmem:[%s891 + $0x98] sm:$0xff]
      %v912 = vld [vmem:[%s891 + $0xa0] sm:$0xff]
      %v913 = vld [vmem:[%s891 + $0xa8] sm:$0xff]
      %v914 = vld [vmem:[%s891 + $0xb0] sm:$0xff]
      %v915 = vld [vmem:[%s891 + $0xb8] sm:$0xff]
      %v916 = vld [vmem:[%s891 + $0xc0] sm:$0xff]
      %v917 = vld [vmem:[%s891 + $0xc8] sm:$0xff]
      %v918 = vld [vmem:[%s891 + $0xd0] sm:$0xff]
      %v919 = vld [vmem:[%s891 + $0xd8] sm:$0xff]
      %v920 = vld [vmem:[%s891 + $0xe0] sm:$0xff]
      %v921 = vld [vmem:[%s891 + $0xe8] sm:$0xff]
      %v922 = vld [vmem:[%s891 + $0xf0] sm:$0xff]
      %v923 = vld [vmem:[%s891 + $0xf8] sm:$0xff]
      %s924 = scalar_lea.vmem %s1, 32
      %v925 = vld [vmem:[%s924] sm:$0xff]
      %v926 = vld [vmem:[%s924 + $0x8] sm:$0xf]
      %v928 = vsel %vm241, %v892, 0
      %v931 = vsel %vm241, %v893, 0
      %v934 = vsel %vm241, %v894, 0
      %v937 = vsel %vm241, %v895, 0
      %v940 = vsel %vm241, %v896, 0
      %v943 = vsel %vm241, %v897, 0
      %v946 = vsel %vm241, %v898, 0
      %v949 = vsel %vm241, %v899, 0
      %v952 = vsel %vm241, %v900, 0
      %v955 = vsel %vm241, %v901, 0
      %v958 = vsel %vm241, %v902, 0
      %v961 = vsel %vm241, %v903, 0
      %v964 = vsel %vm241, %v904, 0
      %v967 = vsel %vm241, %v905, 0
      %v970 = vsel %vm241, %v906, 0
      %v973 = vsel %vm241, %v907, 0
      %v976 = vsel %vm241, %v908, 0
      %v979 = vsel %vm241, %v909, 0
      %v982 = vsel %vm241, %v910, 0
      %v985 = vsel %vm241, %v911, 0
      %v988 = vsel %vm241, %v912, 0
      %v991 = vsel %vm241, %v913, 0
      %v994 = vsel %vm241, %v914, 0
      %v997 = vsel %vm241, %v915, 0
      %v1000 = vsel %vm241, %v916, 0
      %v1003 = vsel %vm241, %v917, 0
      %v1006 = vsel %vm241, %v918, 0
      %v1009 = vsel %vm241, %v919, 0
      %v1012 = vsel %vm241, %v920, 0
      %v1015 = vsel %vm241, %v921, 0
      %v1018 = vsel %vm241, %v922, 0
      %v1021 = vsel %vm241, %v923, 0
      %v1024 = vsel %vm338, %v926, 0
      %1026 = vmatprep.subr.mxu0 0.0
      %1027 = vmatpush1.msra.mxu0 0.0
      %1028 = vmatprep.subr.mxu0 0.0
      %1029 = vmatpush1.msra.mxu0 0.0
      %1030 = vmatprep.subr.mxu0 0.0
      %1031 = vmatpush1.msra.mxu0 0.0
      %1032 = vmatprep.subr.mxu0 0.0
      %1033 = vmatpush1.msra.mxu0 0.0
      %1034 = vmatprep.subr.mxu0 0.0
      %1035 = vmatpush1.msra.mxu0 0.0
      %1036 = vmatprep.subr.mxu0 0.0
      %1037 = vmatpush1.msra.mxu0 0.0
      %1038 = vmatprep.subr.mxu0 0.0
      %1039 = vmatpush1.msra.mxu0 0.0
      %1040 = vmatprep.subr.mxu0 0.0
      %1041 = vmatpush1.msra.mxu0 0.0
      %1042 = vmatprep.subr.mxu0 0.0
      %1043 = vmatpush1.msra.mxu0 0.0
      %1044 = vmatprep.subr.mxu0 0.0
      %1045 = vmatpush1.msra.mxu0 0.0
      %1046 = vmatprep.subr.mxu0 0.0
      %1047 = vmatpush1.msra.mxu0 0.0
      %1048 = vmatprep.subr.mxu0 0.0
      %1049 = vmatpush1.msra.mxu0 0.0
      %1050 = vmatprep.subr.mxu0 0.0
      %1051 = vmatpush1.msra.mxu0 0.0
      %1052 = vmatprep.subr.mxu0 0.0
      %1053 = vmatpush1.msra.mxu0 0.0
      %1054 = vmatprep.subr.mxu0 0.0
      %1055 = vmatpush1.msra.mxu0 %v1024
      %1056 = vmatprep.subr.mxu0 0.0
      %1057 = vmatpush1.msra.mxu0 %v925
      %1058 = vmatprep.subr.mxu0 0.0
      %1059 = vmatpush2.msra.mxu0 0.0
      %1060 = vmatprep.subr.mxu0 0.0
      %1061 = vmatpush2.msra.mxu0 0.0
      %1062 = vmatprep.subr.mxu0 0.0
      %1063 = vmatpush2.msra.mxu0 0.0
      %1064 = vmatprep.subr.mxu0 0.0
      %1065 = vmatpush2.msra.mxu0 0.0
      %1066 = vmatprep.subr.mxu0 0.0
      %1067 = vmatpush2.msra.mxu0 0.0
      %1068 = vmatprep.subr.mxu0 0.0
      %1069 = vmatpush2.msra.mxu0 0.0
      %1070 = vmatprep.subr.mxu0 0.0
      %1071 = vmatpush2.msra.mxu0 0.0
      %1072 = vmatprep.subr.mxu0 0.0
      %1073 = vmatpush2.msra.mxu0 0.0
      %1074 = vmatprep.subr.mxu0 0.0
      %1075 = vmatpush2.msra.mxu0 0.0
      %1076 = vmatprep.subr.mxu0 0.0
      %1077 = vmatpush2.msra.mxu0 0.0
      %1078 = vmatprep.subr.mxu0 0.0
      %1079 = vmatpush2.msra.mxu0 0.0
      %1080 = vmatprep.subr.mxu0 0.0
      %1081 = vmatpush2.msra.mxu0 0.0
      %1082 = vmatprep.subr.mxu0 0.0
      %1083 = vmatpush2.msra.mxu0 0.0
      %1084 = vmatprep.subr.mxu0 0.0
      %1085 = vmatpush2.msra.mxu0 0.0
      %1086 = vmatprep.subr.mxu0 0.0
      %1087 = vmatpush2.msra.mxu0 0.0
      %1088 = vmatprep.subr.mxu0 0.0
      %1089 = vmatpush2.msra.mxu0 0.0
      %1090 = vmatprep.mubr.f32.mxu0 0.0
      %1091 = vmatmul.mubr.f32.gmra.mxu0 %v928
      %v1092 = vpop.f32.mrf.mxu0
      %v1093 = vadd.f32 0.0, %v1092
      %v1094 = vpop.f32.mrf.mxu0
      %1095 = vmatprep.mubr.f32.mxu0 0.0
      %1096 = vmatmul.mubr.f32.gmra.mxu0 %v931
      %v1097 = vpop.f32.mrf.mxu0
      %v1098 = vadd.f32 0.0, %v1097
      %v1099 = vpop.f32.mrf.mxu0
      %1100 = vmatprep.mubr.f32.mxu0 0.0
      %1101 = vmatmul.mubr.f32.gmra.mxu0 %v934
      %v1102 = vpop.f32.mrf.mxu0
      %v1103 = vadd.f32 0.0, %v1102
      %v1104 = vpop.f32.mrf.mxu0
      %1105 = vmatprep.mubr.f32.mxu0 0.0
      %1106 = vmatmul.mubr.f32.gmra.mxu0 %v937
      %v1107 = vpop.f32.mrf.mxu0
      %v1108 = vadd.f32 0.0, %v1107
      %v1109 = vpop.f32.mrf.mxu0
      %1110 = vmatprep.mubr.f32.mxu0 0.0
      %1111 = vmatmul.mubr.f32.gmra.mxu0 %v940
      %v1112 = vpop.f32.mrf.mxu0
      %v1113 = vadd.f32 0.0, %v1112
      %v1114 = vpop.f32.mrf.mxu0
      %1115 = vmatprep.mubr.f32.mxu0 0.0
      %1116 = vmatmul.mubr.f32.gmra.mxu0 %v943
      %v1117 = vpop.f32.mrf.mxu0
      %v1118 = vadd.f32 0.0, %v1117
      %v1119 = vpop.f32.mrf.mxu0
      %1120 = vmatprep.mubr.f32.mxu0 0.0
      %1121 = vmatmul.mubr.f32.gmra.mxu0 %v946
      %v1122 = vpop.f32.mrf.mxu0
      %v1123 = vadd.f32 0.0, %v1122
      %v1124 = vpop.f32.mrf.mxu0
      %1125 = vmatprep.mubr.f32.mxu0 0.0
      %1126 = vmatmul.mubr.f32.gmra.mxu0 %v949
      %v1127 = vpop.f32.mrf.mxu0
      %v1128 = vadd.f32 0.0, %v1127
      %v1129 = vpop.f32.mrf.mxu0
      %1130 = vmatprep.mubr.f32.mxu0 0.0
      %1131 = vmatmul.mubr.f32.gmra.mxu0 %v952
      %v1132 = vpop.f32.mrf.mxu0
      %v1133 = vadd.f32 0.0, %v1132
      %v1134 = vpop.f32.mrf.mxu0
      %1135 = vmatprep.mubr.f32.mxu0 0.0
      %1136 = vmatmul.mubr.f32.gmra.mxu0 %v955
      %v1137 = vpop.f32.mrf.mxu0
      %v1138 = vadd.f32 0.0, %v1137
      %v1139 = vpop.f32.mrf.mxu0
      %1140 = vmatprep.mubr.f32.mxu0 0.0
      %1141 = vmatmul.mubr.f32.gmra.mxu0 %v958
      %v1142 = vpop.f32.mrf.mxu0
      %v1143 = vadd.f32 0.0, %v1142
      %v1144 = vpop.f32.mrf.mxu0
      %1145 = vmatprep.mubr.f32.mxu0 0.0
      %1146 = vmatmul.mubr.f32.gmra.mxu0 %v961
      %v1147 = vpop.f32.mrf.mxu0
      %v1148 = vadd.f32 0.0, %v1147
      %v1149 = vpop.f32.mrf.mxu0
      %1150 = vmatprep.mubr.f32.mxu0 0.0
      %1151 = vmatmul.mubr.f32.gmra.mxu0 %v964
      %v1152 = vpop.f32.mrf.mxu0
      %v1153 = vadd.f32 0.0, %v1152
      %v1154 = vpop.f32.mrf.mxu0
      %1155 = vmatprep.mubr.f32.mxu0 0.0
      %1156 = vmatmul.mubr.f32.gmra.mxu0 %v967
      %v1157 = vpop.f32.mrf.mxu0
      %v1158 = vadd.f32 0.0, %v1157
      %v1159 = vpop.f32.mrf.mxu0
      %1160 = vmatprep.mubr.f32.mxu0 0.0
      %1161 = vmatmul.mubr.f32.gmra.mxu0 %v970
      %v1162 = vpop.f32.mrf.mxu0
      %v1163 = vadd.f32 0.0, %v1162
      %v1164 = vpop.f32.mrf.mxu0
      %1165 = vmatprep.mubr.f32.mxu0 0.0
      %1166 = vmatmul.mubr.f32.gmra.mxu0 %v973
      %v1167 = vpop.f32.mrf.mxu0
      %v1168 = vadd.f32 0.0, %v1167
      %v1169 = vpop.f32.mrf.mxu0
      %1170 = vmatprep.mubr.f32.mxu0 0.0
      %1171 = vmatmul.mubr.f32.gmra.mxu0 %v976
      %v1172 = vpop.f32.mrf.mxu0
      %v1173 = vadd.f32 0.0, %v1172
      %v1174 = vpop.f32.mrf.mxu0
      %1175 = vmatprep.mubr.f32.mxu0 0.0
      %1176 = vmatmul.mubr.f32.gmra.mxu0 %v979
      %v1177 = vpop.f32.mrf.mxu0
      %v1178 = vadd.f32 0.0, %v1177
      %v1179 = vpop.f32.mrf.mxu0
      %1180 = vmatprep.mubr.f32.mxu0 0.0
      %1181 = vmatmul.mubr.f32.gmra.mxu0 %v982
      %v1182 = vpop.f32.mrf.mxu0
      %v1183 = vadd.f32 0.0, %v1182
      %v1184 = vpop.f32.mrf.mxu0
      %1185 = vmatprep.mubr.f32.mxu0 0.0
      %1186 = vmatmul.mubr.f32.gmra.mxu0 %v985
      %v1187 = vpop.f32.mrf.mxu0
      %v1188 = vadd.f32 0.0, %v1187
      %v1189 = vpop.f32.mrf.mxu0
      %1190 = vmatprep.mubr.f32.mxu0 0.0
      %1191 = vmatmul.mubr.f32.gmra.mxu0 %v988
      %v1192 = vpop.f32.mrf.mxu0
      %v1193 = vadd.f32 0.0, %v1192
      %v1194 = vpop.f32.mrf.mxu0
      %1195 = vmatprep.mubr.f32.mxu0 0.0
      %1196 = vmatmul.mubr.f32.gmra.mxu0 %v991
      %v1197 = vpop.f32.mrf.mxu0
      %v1198 = vadd.f32 0.0, %v1197
      %v1199 = vpop.f32.mrf.mxu0
      %1200 = vmatprep.mubr.f32.mxu0 0.0
      %1201 = vmatmul.mubr.f32.gmra.mxu0 %v994
      %v1202 = vpop.f32.mrf.mxu0
      %v1203 = vadd.f32 0.0, %v1202
      %v1204 = vpop.f32.mrf.mxu0
      %1205 = vmatprep.mubr.f32.mxu0 0.0
      %1206 = vmatmul.mubr.f32.gmra.mxu0 %v997
      %v1207 = vpop.f32.mrf.mxu0
      %v1208 = vadd.f32 0.0, %v1207
      %v1209 = vpop.f32.mrf.mxu0
      %1210 = vmatprep.mubr.f32.mxu0 0.0
      %1211 = vmatmul.mubr.f32.gmra.mxu0 %v1000
      %v1212 = vpop.f32.mrf.mxu0
      %v1213 = vadd.f32 0.0, %v1212
      %v1214 = vpop.f32.mrf.mxu0
      %1215 = vmatprep.mubr.f32.mxu0 0.0
      %1216 = vmatmul.mubr.f32.gmra.mxu0 %v1003
      %v1217 = vpop.f32.mrf.mxu0
      %v1218 = vadd.f32 0.0, %v1217
      %v1219 = vpop.f32.mrf.mxu0
      %1220 = vmatprep.mubr.f32.mxu0 0.0
      %1221 = vmatmul.mubr.f32.gmra.mxu0 %v1006
      %v1222 = vpop.f32.mrf.mxu0
      %v1223 = vadd.f32 0.0, %v1222
      %v1224 = vpop.f32.mrf.mxu0
      %1225 = vmatprep.mubr.f32.mxu0 0.0
      %1226 = vmatmul.mubr.f32.gmra.mxu0 %v1009
      %v1227 = vpop.f32.mrf.mxu0
      %v1228 = vadd.f32 0.0, %v1227
      %v1229 = vpop.f32.mrf.mxu0
      %1230 = vmatprep.mubr.f32.mxu0 0.0
      %1231 = vmatmul.mubr.f32.gmra.mxu0 %v1012
      %v1232 = vpop.f32.mrf.mxu0
      %v1233 = vadd.f32 0.0, %v1232
      %v1234 = vpop.f32.mrf.mxu0
      %1235 = vmatprep.mubr.f32.mxu0 0.0
      %1236 = vmatmul.mubr.f32.gmra.mxu0 %v1015
      %v1237 = vpop.f32.mrf.mxu0
      %v1238 = vadd.f32 0.0, %v1237
      %v1239 = vpop.f32.mrf.mxu0
      %1240 = vmatprep.mubr.f32.mxu0 0.0
      %1241 = vmatmul.mubr.f32.gmra.mxu0 %v1018
      %v1242 = vpop.f32.mrf.mxu0
      %v1243 = vadd.f32 0.0, %v1242
      %v1244 = vpop.f32.mrf.mxu0
      %1245 = vmatprep.mubr.f32.mxu0 0.0
      %1246 = vmatmul.mubr.f32.gmra.mxu0 %v1021
      %v1247 = vpop.f32.mrf.mxu0
      %v1248 = vadd.f32 0.0, %v1247
      %v1249 = vpop.f32.mrf.mxu0
      %1250 = vdwg.mxu0
      %v1251 = vadd.f32 %v733, %v1093
      %v1252 = vadd.f32 %v738, %v1098
      %v1253 = vadd.f32 %v743, %v1103
      %v1254 = vadd.f32 %v748, %v1108
      %v1255 = vadd.f32 %v753, %v1113
      %v1256 = vadd.f32 %v758, %v1118
      %v1257 = vadd.f32 %v763, %v1123
      %v1258 = vadd.f32 %v768, %v1128
      %v1259 = vadd.f32 %v773, %v1133
      %v1260 = vadd.f32 %v778, %v1138
      %v1261 = vadd.f32 %v783, %v1143
      %v1262 = vadd.f32 %v788, %v1148
      %v1263 = vadd.f32 %v793, %v1153
      %v1264 = vadd.f32 %v798, %v1158
      %v1265 = vadd.f32 %v803, %v1163
      %v1266 = vadd.f32 %v808, %v1168
      %v1267 = vadd.f32 %v813, %v1173
      %v1268 = vadd.f32 %v818, %v1178
      %v1269 = vadd.f32 %v823, %v1183
      %v1270 = vadd.f32 %v828, %v1188
      %v1271 = vadd.f32 %v833, %v1193
      %v1272 = vadd.f32 %v838, %v1198
      %v1273 = vadd.f32 %v843, %v1203
      %v1274 = vadd.f32 %v848, %v1208
      %v1275 = vadd.f32 %v853, %v1213
      %v1276 = vadd.f32 %v858, %v1218
      %v1277 = vadd.f32 %v863, %v1223
      %v1278 = vadd.f32 %v868, %v1228
      %v1279 = vadd.f32 %v873, %v1233
      %v1280 = vadd.f32 %v878, %v1238
      %v1281 = vadd.f32 %v883, %v1243
      %v1282 = vadd.f32 %v888, %v1248
      %v1283 = vld [vmem:[%s2] sm:$0x1]
      %v1285 = vlaneseq
      %v1286 = vshrl.u32 %v1285, 7
      %v1287 = vsub.s32 0, %v1286
      %v1288 = vrot.slane %v1283, %v1287
      %v1290 = vadd.f32 %v1251, %v1288
      %v1291 = vadd.f32 %v1252, %v1288
      %v1292 = vadd.f32 %v1253, %v1288
      %v1293 = vadd.f32 %v1254, %v1288
      %v1294 = vadd.f32 %v1255, %v1288
      %v1295 = vadd.f32 %v1256, %v1288
      %v1296 = vadd.f32 %v1257, %v1288
      %v1297 = vadd.f32 %v1258, %v1288
      %v1298 = vadd.f32 %v1259, %v1288
      %v1299 = vadd.f32 %v1260, %v1288
      %v1300 = vadd.f32 %v1261, %v1288
      %v1301 = vadd.f32 %v1262, %v1288
      %v1302 = vadd.f32 %v1263, %v1288
      %v1303 = vadd.f32 %v1264, %v1288
      %v1304 = vadd.f32 %v1265, %v1288
      %v1305 = vadd.f32 %v1266, %v1288
      %v1306 = vadd.f32 %v1267, %v1288
      %v1307 = vadd.f32 %v1268, %v1288
      %v1308 = vadd.f32 %v1269, %v1288
      %v1309 = vadd.f32 %v1270, %v1288
      %v1310 = vadd.f32 %v1271, %v1288
      %v1311 = vadd.f32 %v1272, %v1288
      %v1312 = vadd.f32 %v1273, %v1288
      %v1313 = vadd.f32 %v1274, %v1288
      %v1314 = vadd.f32 %v1275, %v1288
      %v1315 = vadd.f32 %v1276, %v1288
      %v1316 = vadd.f32 %v1277, %v1288
      %v1317 = vadd.f32 %v1278, %v1288
      %v1318 = vadd.f32 %v1279, %v1288
      %v1319 = vadd.f32 %v1280, %v1288
      %v1320 = vadd.f32 %v1281, %v1288
      %v1321 = vadd.f32 %v1282, %v1288
      %vm1322 = vcmask 31744
      %1323 = vst.msk [vmem:[%s170] sm:$0xff] %vm1322, %v1290
      %1324 = vst.msk [vmem:[%s170 + $0x8] sm:$0xff] %vm1322, %v1291
      %1325 = vst.msk [vmem:[%s170 + $0x10] sm:$0xff] %vm1322, %v1292
      %1326 = vst.msk [vmem:[%s170 + $0x18] sm:$0xff] %vm1322, %v1293
      %1327 = vst.msk [vmem:[%s170 + $0x20] sm:$0xff] %vm1322, %v1294
      %1328 = vst.msk [vmem:[%s170 + $0x28] sm:$0xff] %vm1322, %v1295
      %1329 = vst.msk [vmem:[%s170 + $0x30] sm:$0xff] %vm1322, %v1296
      %1330 = vst.msk [vmem:[%s170 + $0x38] sm:$0xff] %vm1322, %v1297
      %1331 = vst.msk [vmem:[%s170 + $0x40] sm:$0xff] %vm1322, %v1298
      %1332 = vst.msk [vmem:[%s170 + $0x48] sm:$0xff] %vm1322, %v1299
      %1333 = vst.msk [vmem:[%s170 + $0x50] sm:$0xff] %vm1322, %v1300
      %1334 = vst.msk [vmem:[%s170 + $0x58] sm:$0xff] %vm1322, %v1301
      %1335 = vst.msk [vmem:[%s170 + $0x60] sm:$0xff] %vm1322, %v1302
      %1336 = vst.msk [vmem:[%s170 + $0x68] sm:$0xff] %vm1322, %v1303
      %1337 = vst.msk [vmem:[%s170 + $0x70] sm:$0xff] %vm1322, %v1304
      %1338 = vst.msk [vmem:[%s170 + $0x78] sm:$0xff] %vm1322, %v1305
      %1339 = vst.msk [vmem:[%s170 + $0x80] sm:$0xff] %vm1322, %v1306
      %1340 = vst.msk [vmem:[%s170 + $0x88] sm:$0xff] %vm1322, %v1307
      %1341 = vst.msk [vmem:[%s170 + $0x90] sm:$0xff] %vm1322, %v1308
      %1342 = vst.msk [vmem:[%s170 + $0x98] sm:$0xff] %vm1322, %v1309
      %1343 = vst.msk [vmem:[%s170 + $0xa0] sm:$0xff] %vm1322, %v1310
      %1344 = vst.msk [vmem:[%s170 + $0xa8] sm:$0xff] %vm1322, %v1311
      %1345 = vst.msk [vmem:[%s170 + $0xb0] sm:$0xff] %vm1322, %v1312
      %1346 = vst.msk [vmem:[%s170 + $0xb8] sm:$0xff] %vm1322, %v1313
      %1347 = vst.msk [vmem:[%s170 + $0xc0] sm:$0xff] %vm1322, %v1314
      %1348 = vst.msk [vmem:[%s170 + $0xc8] sm:$0xff] %vm1322, %v1315
      %1349 = vst.msk [vmem:[%s170 + $0xd0] sm:$0xff] %vm1322, %v1316
      %1350 = vst.msk [vmem:[%s170 + $0xd8] sm:$0xff] %vm1322, %v1317
      %1351 = vst.msk [vmem:[%s170 + $0xe0] sm:$0xff] %vm1322, %v1318
      %1352 = vst.msk [vmem:[%s170 + $0xe8] sm:$0xff] %vm1322, %v1319
      %1353 = vst.msk [vmem:[%s170 + $0xf0] sm:$0xff] %vm1322, %v1320
      %1354 = vst.msk [vmem:[%s170 + $0xf8] sm:$0xff] %vm1322, %v1321
      %p1355 = scmp.lt.s32.totalorder %s14, 1
      %s1356 = scalar_select %p1355, %s14, 1
      %s1357 = smul.addr %s1356, 32
      %s1358 = smul.addr %s1357, 8
      %s1359 = scalar_lea.vmem %s3, %s1358
      // Predicated region
      $region33: #{tpu_custom_call.1} parent=31 // pred_check
        %p1360 = pneg %p100
      $region34: #{tpu_custom_call.1} parent=31 // pred_check_branch
        %1362 = sbr.rel (%p1360) target = $region36
      $region35: #{tpu_custom_call.1} parent=31 // pred_region
        _
      $region36: #{tpu_custom_call.1} parent=31 // pred_fallthru
        _
    $region32: #{tpu_custom_call.1} parent=5 // pred_fallthru
      _
    %p1363 = scmp.le.s32.totalorder 2, %s9
    // Predicated region
    $region37: #{tpu_custom_call.1} parent=5 // pred_check
      %p1364 = pneg %p1363
    $region38: #{tpu_custom_call.1} parent=5 // pred_check_branch
      %1366 = sbr.rel (%p1364) target = $region40
    $region39: #{tpu_custom_call.1} parent=5 // pred_region
      %s1367 = ssub.s32 %s9, 2
      // Predicated region
      $region41: #{tpu_custom_call.1} parent=39 // pred_check
        %p1368 = pneg %p106
      $region42: #{tpu_custom_call.1} parent=39 // pred_check_branch
        %1370 = sbr.rel (%p1368) target = $region44
      $region43: #{tpu_custom_call.1} parent=39 // pred_region
        %p1371 = scmp.lt.s32.totalorder %s15, 1
        %s1372 = scalar_select %p1371, %s15, 1
        %s1373 = smul.addr %s1372, 32
        %s1374 = smul.addr %s1373, 8
        %s1375 = scalar_lea.vmem %s3, %s1374
      $region44: #{tpu_custom_call.1} parent=39 // pred_fallthru
        _
    $region40: #{tpu_custom_call.1} parent=5 // pred_fallthru
      _
  $region6: #{tpu_custom_call.1} parent=0 // loop_footer
    %s13 = sadd.s32 1, %s9
  $region7: #{tpu_custom_call.1} parent=0 // loop_footer_branch
    %8 = sbr.rel target = $region3
  $region8: #{tpu_custom_call.1} parent=0 // loop_exit
    _

</llo_original>
